<compile_context>
chip_gen: v6e
topology: v6e:2x2x1
jax: 0.10.0
libtpu: 0.0.40
codegen_flags: <defaults>
</compile_context>

<pallas_src>
import jax
import jax.numpy as jnp
from jax.experimental import pallas as pl
from jax.experimental.pallas import tpu as pltpu

B = 2
C = 16
H_IN, W_IN = 10, 10
K, S = 2, 2
H_OUT, W_OUT = H_IN // S, W_IN // S      # 5, 5
BC = B * C                               # 32


def s4_kernel(x_ref, scale_ref, shift_ref, o_ref):
    # x_ref:     VMEM (BC, H_OUT, 2*W_IN) — input rows 2p and 2p+1 concatenated along lanes.
    # scale_ref: VMEM (BC, H_OUT, 1) — per-(b,c) weight (lane-broadcastable).
    # shift_ref: VMEM (BC, H_OUT, 1) — per-(b,c) bias.
    # o_ref:     VMEM (BC, H_OUT, W_OUT)

    # Vertical half of the 2x2 window: x[2p, :] + x[2p+1, :], sliced directly off the ref.
    rows = x_ref[:, :, 0:W_IN] + x_ref[:, :, W_IN:2 * W_IN]          # (BC, 5, 10)

    # Horizontal half: sum adjacent lane pairs, assemble all output columns, store once.
    cols = [rows[:, :, 2 * j:2 * j + 1] + rows[:, :, 2 * j + 1:2 * j + 2]
            for j in range(W_OUT)]                                    # 5 x (BC, 5, 1)
    pooled = jnp.concatenate(cols, axis=2)                            # (BC, 5, 5) == sum pool

    # Fused affine epilogue (avg_pool * 4 == sum pool, so no extra rescale is needed).
    o_ref[...] = pooled * scale_ref[...] + shift_ref[...]


def s4_forward(x, weight, bias):
    """x: (B, C, 10, 10) f32; weight: (C,) f32; bias: (C,) f32 -> (B, C, 5, 5) f32."""
    assert x.shape == (B, C, H_IN, W_IN)

    # Free (contiguous, metadata-only) reshape: rows 2p / 2p+1 land side-by-side on lanes.
    x_rows = x.reshape(BC, H_OUT, 2 * W_IN)

    # Tiny per-(b,c) parameter slabs so the in-kernel affine is a pure lane-broadcast FMA.
    scale = jnp.broadcast_to(jnp.tile(weight, B)[:, None, None], (BC, H_OUT, 1))
    shift = jnp.broadcast_to(jnp.tile(bias, B)[:, None, None], (BC, H_OUT, 1))

    flops = (BC * H_OUT * W_IN            # vertical pair adds
             + BC * H_OUT * W_OUT         # horizontal pair adds
             + 2 * BC * H_OUT * W_OUT)    # fused scale + bias
    bytes_accessed = 4 * (BC * H_OUT * 2 * W_IN + 2 * BC * H_OUT + BC * H_OUT * W_OUT)

    out = pl.pallas_call(
        s4_kernel,
        out_shape=jax.ShapeDtypeStruct((BC, H_OUT, W_OUT), jnp.float32),
        grid=(1,),  # whole problem fits VMEM; collapsed grid avoids per-step overhead
        in_specs=[
            pl.BlockSpec((BC, H_OUT, 2 * W_IN), lambda i: (0, 0, 0)),
            pl.BlockSpec((BC, H_OUT, 1), lambda i: (0, 0, 0)),
            pl.BlockSpec((BC, H_OUT, 1), lambda i: (0, 0, 0)),
        ],
        out_specs=pl.BlockSpec((BC, H_OUT, W_OUT), lambda i: (0, 0, 0)),
        compiler_params=pltpu.CompilerParams(
            dimension_semantics=("arbitrary",)),
        cost_estimate=pl.CostEstimate(
            flops=flops, transcendentals=0, bytes_accessed=bytes_accessed),
    )(x_rows, scale, shift)

    # Free reshape back to the NCHW output layout of the PyTorch module.
    return out.reshape(B, C, H_OUT, W_OUT)


if __name__ == "__main__":
    key = jax.random.PRNGKey(0)
    kx, kw, kb = jax.random.split(key, 3)

    x = jax.random.normal(kx, (B, C, H_IN, W_IN), jnp.float32)
    # The module initializes weight=ones, bias=zeros; random values here so the fused
    # affine path is actually exercised by the correctness check.
    weight = jax.random.normal(kw, (C,), jnp.float32)
    bias = jax.random.normal(kb, (C,), jnp.float32)

    y = s4_forward(x, weight, bias)
    y = jax.block_until_ready(y)

    # Reference: avg_pool2d(x, 2, 2, 0) * 4 == 2x2 sum pooling, then per-channel affine.
    pooled_ref = x.reshape(B, C, H_OUT, K, W_OUT, K).sum(axis=(3, 5))
    y_ref = weight[None, :, None, None] * pooled_ref + bias[None, :, None, None]

    assert y.shape == (B, C, H_OUT, W_OUT)
    assert jnp.allclose(y, y_ref, atol=1e-5, rtol=1e-5)
    print("KERNEL_OK")
</pallas_src>

<mosaic_0001>
module attributes {stable_mosaic.version = 11 : i64} {
  func.func @s4_kernel(%arg0: i32, %arg1: memref<32x5x20xf32, #tpu.memory_space<vmem>>, %arg2: memref<32x5x1xf32, #tpu.memory_space<vmem>>, %arg3: memref<32x5x1xf32, #tpu.memory_space<vmem>>, %arg4: memref<32x5x5xf32, #tpu.memory_space<vmem>>) attributes {dimension_semantics = [#tpu.dimension_semantics<arbitrary>], iteration_bounds = array<i64: 1>, scalar_prefetch = 0 : i64, scratch_operands = 0 : i64, tpu.core_type = #tpu.core_type<tc>, window_params = [{pipeline_mode = #tpu.pipeline_mode<synchronous>, transform_indices = @transform_0, window_bounds = array<i64: 32, 5, 20>}, {pipeline_mode = #tpu.pipeline_mode<synchronous>, transform_indices = @transform_1, window_bounds = array<i64: 32, 5, 1>}, {pipeline_mode = #tpu.pipeline_mode<synchronous>, transform_indices = @transform_2, window_bounds = array<i64: 32, 5, 1>}, {pipeline_mode = #tpu.pipeline_mode<synchronous>, transform_indices = @transform_3, window_bounds = array<i64: 32, 5, 5>}]} {
    %c0 = arith.constant 0 : index
    %c0_0 = arith.constant 0 : index
    %c0_1 = arith.constant 0 : index
    %0 = vector.load %arg1[%c0, %c0_0, %c0_1] : memref<32x5x20xf32, #tpu.memory_space<vmem>>, vector<32x5x10xf32>
    %c0_2 = arith.constant 0 : index
    %c0_3 = arith.constant 0 : index
    %c10 = arith.constant 10 : index
    %1 = vector.load %arg1[%c0_2, %c0_3, %c10] : memref<32x5x20xf32, #tpu.memory_space<vmem>>, vector<32x5x10xf32>
    %2 = arith.addf %0, %1 : vector<32x5x10xf32>
    %3 = vector.extract_strided_slice %2 {offsets = [0, 0, 0], sizes = [32, 5, 1], strides = [1, 1, 1]} : vector<32x5x10xf32> to vector<32x5x1xf32>
    %4 = vector.extract_strided_slice %2 {offsets = [0, 0, 1], sizes = [32, 5, 1], strides = [1, 1, 1]} : vector<32x5x10xf32> to vector<32x5x1xf32>
    %5 = arith.addf %3, %4 : vector<32x5x1xf32>
    %6 = vector.extract_strided_slice %2 {offsets = [0, 0, 2], sizes = [32, 5, 1], strides = [1, 1, 1]} : vector<32x5x10xf32> to vector<32x5x1xf32>
    %7 = vector.extract_strided_slice %2 {offsets = [0, 0, 3], sizes = [32, 5, 1], strides = [1, 1, 1]} : vector<32x5x10xf32> to vector<32x5x1xf32>
    %8 = arith.addf %6, %7 : vector<32x5x1xf32>
    %9 = vector.extract_strided_slice %2 {offsets = [0, 0, 4], sizes = [32, 5, 1], strides = [1, 1, 1]} : vector<32x5x10xf32> to vector<32x5x1xf32>
    %10 = vector.extract_strided_slice %2 {offsets = [0, 0, 5], sizes = [32, 5, 1], strides = [1, 1, 1]} : vector<32x5x10xf32> to vector<32x5x1xf32>
    %11 = arith.addf %9, %10 : vector<32x5x1xf32>
    %12 = vector.extract_strided_slice %2 {offsets = [0, 0, 6], sizes = [32, 5, 1], strides = [1, 1, 1]} : vector<32x5x10xf32> to vector<32x5x1xf32>
    %13 = vector.extract_strided_slice %2 {offsets = [0, 0, 7], sizes = [32, 5, 1], strides = [1, 1, 1]} : vector<32x5x10xf32> to vector<32x5x1xf32>
    %14 = arith.addf %12, %13 : vector<32x5x1xf32>
    %15 = vector.extract_strided_slice %2 {offsets = [0, 0, 8], sizes = [32, 5, 1], strides = [1, 1, 1]} : vector<32x5x10xf32> to vector<32x5x1xf32>
    %16 = vector.extract_strided_slice %2 {offsets = [0, 0, 9], sizes = [32, 5, 1], strides = [1, 1, 1]} : vector<32x5x10xf32> to vector<32x5x1xf32>
    %17 = arith.addf %15, %16 : vector<32x5x1xf32>
    %18 = tpu.concatenate %5, %8, %11, %14, %17 in 2 : vector<32x5x1xf32>, vector<32x5x1xf32>, vector<32x5x1xf32>, vector<32x5x1xf32>, vector<32x5x1xf32> -> vector<32x5x5xf32>
    %c0_4 = arith.constant 0 : index
    %c0_5 = arith.constant 0 : index
    %c0_6 = arith.constant 0 : index
    %19 = vector.load %arg2[%c0_4, %c0_5, %c0_6] : memref<32x5x1xf32, #tpu.memory_space<vmem>>, vector<32x5x1xf32>
    %20 = vector.broadcast %19 : vector<32x5x1xf32> to vector<32x5x5xf32>
    %21 = arith.mulf %18, %20 : vector<32x5x5xf32>
    %c0_7 = arith.constant 0 : index
    %c0_8 = arith.constant 0 : index
    %c0_9 = arith.constant 0 : index
    %22 = vector.load %arg3[%c0_7, %c0_8, %c0_9] : memref<32x5x1xf32, #tpu.memory_space<vmem>>, vector<32x5x1xf32>
    %23 = vector.broadcast %22 : vector<32x5x1xf32> to vector<32x5x5xf32>
    %24 = arith.addf %21, %23 : vector<32x5x5xf32>
    %c0_10 = arith.constant 0 : index
    %c0_11 = arith.constant 0 : index
    %c0_12 = arith.constant 0 : index
    %25 = vector.load %arg4[%c0_10, %c0_11, %c0_12] : memref<32x5x5xf32, #tpu.memory_space<vmem>>, vector<32x5x5xf32>
    tpu.vector_store %arg4[%c0_10, %c0_11, %c0_12], %24 {strides = array<i32>} : memref<32x5x5xf32, #tpu.memory_space<vmem>>, vector<32x5x5xf32>,
    return
  }
  func.func @transform_0(%arg0: i32) -> (i32, i32, i32) {
    %c0_i32 = arith.constant 0 : i32
    %c0_i32_0 = arith.constant 0 : i32
    %c0_i32_1 = arith.constant 0 : i32
    %c0_i32_2 = arith.constant 0 : i32
    return %c0_i32, %c0_i32_0, %c0_i32_1 : i32, i32, i32
  }
  func.func @transform_1(%arg0: i32) -> (i32, i32, i32) {
    %c0_i32 = arith.constant 0 : i32
    %c0_i32_0 = arith.constant 0 : i32
    %c0_i32_1 = arith.constant 0 : i32
    %c0_i32_2 = arith.constant 0 : i32
    return %c0_i32, %c0_i32_0, %c0_i32_1 : i32, i32, i32
  }
  func.func @transform_2(%arg0: i32) -> (i32, i32, i32) {
    %c0_i32 = arith.constant 0 : i32
    %c0_i32_0 = arith.constant 0 : i32
    %c0_i32_1 = arith.constant 0 : i32
    %c0_i32_2 = arith.constant 0 : i32
    return %c0_i32, %c0_i32_0, %c0_i32_1 : i32, i32, i32
  }
  func.func @transform_3(%arg0: i32) -> (i32, i32, i32) {
    %c0_i32 = arith.constant 0 : i32
    %c0_i32_0 = arith.constant 0 : i32
    %c0_i32_1 = arith.constant 0 : i32
    %c0_i32_2 = arith.constant 0 : i32
    return %c0_i32, %c0_i32_0, %c0_i32_1 : i32, i32, i32
  }
}

</mosaic_0001>

<llo_original>
// kernel: tpu_custom_call.1
$region0: #{tpu_custom_call.1}
  #allocation0 [shape = 'u32[]', space=smem, size = 0x4, offset = 0x4, fixed_abs, tag = 'smem constant byte address 0x4 - core index']
  #allocation1 [shape = 'u32[144,128]{1,0:T(1,128)}', space=vmem, size = 0x12000, scoped, tag = 'internal scratch']
  %s0 = inlined_call_operand.vmem [shape: f32[32,5,20], index: 0, kind: input, shape index: {}]
  %s1 = inlined_call_operand.vmem [shape: f32[32,5,1], index: 1, kind: input, shape index: {}]
  %s2 = inlined_call_operand.vmem [shape: f32[32,5,1], index: 2, kind: input, shape index: {}]
  %s3 = inlined_call_operand.vmem [shape: f32[32,5,5], index: 3, kind: output, shape index: {}]
  %s4 = sld [smem:[#allocation0]]
  $region22: #{tpu_custom_call.1} parent=0
    _
  %s6 = ssub.s32 1, %s4
  %s7 = scalar_select 0, %s6, %s4
  // Predicated region
  $region2: #{tpu_custom_call.1} parent=0 // pred_check
    _
  $region3: #{tpu_custom_call.1} parent=0 // pred_check_branch
    %9 = sbr.rel (0) target = $region5
  $region4: #{tpu_custom_call.1} parent=0 // pred_region
    _
  $region5: #{tpu_custom_call.1} parent=0 // pred_fallthru
    _
  // Predicated region
  $region6: #{tpu_custom_call.1} parent=0 // pred_check
    _
  $region7: #{tpu_custom_call.1} parent=0 // pred_check_branch
    %11 = sbr.rel (0) target = $region9
  $region8: #{tpu_custom_call.1} parent=0 // pred_region
    _
  $region9: #{tpu_custom_call.1} parent=0 // pred_fallthru
    _
  // Predicated region
  $region10: #{tpu_custom_call.1} parent=0 // pred_check
    _
  $region11: #{tpu_custom_call.1} parent=0 // pred_check_branch
    %13 = sbr.rel (0) target = $region13
  $region12: #{tpu_custom_call.1} parent=0 // pred_region
    _
  $region13: #{tpu_custom_call.1} parent=0 // pred_fallthru
    _
  %v14 = vld [vmem:[%s0] sm:$0x1f]
  %v15 = vld [vmem:[%s0 + $0x8] sm:$0x1f]
  %v16 = vld [vmem:[%s0 + $0x10] sm:$0x1f]
  %v17 = vld [vmem:[%s0 + $0x18] sm:$0x1f]
  %v18 = vld [vmem:[%s0 + $0x20] sm:$0x1f]
  %v19 = vld [vmem:[%s0 + $0x28] sm:$0x1f]
  %v20 = vld [vmem:[%s0 + $0x30] sm:$0x1f]
  %v21 = vld [vmem:[%s0 + $0x38] sm:$0x1f]
  %v22 = vld [vmem:[%s0 + $0x40] sm:$0x1f]
  %v23 = vld [vmem:[%s0 + $0x48] sm:$0x1f]
  %v24 = vld [vmem:[%s0 + $0x50] sm:$0x1f]
  %v25 = vld [vmem:[%s0 + $0x58] sm:$0x1f]
  %v26 = vld [vmem:[%s0 + $0x60] sm:$0x1f]
  %v27 = vld [vmem:[%s0 + $0x68] sm:$0x1f]
  %v28 = vld [vmem:[%s0 + $0x70] sm:$0x1f]
  %v29 = vld [vmem:[%s0 + $0x78] sm:$0x1f]
  %v30 = vld [vmem:[%s0 + $0x80] sm:$0x1f]
  %v31 = vld [vmem:[%s0 + $0x88] sm:$0x1f]
  %v32 = vld [vmem:[%s0 + $0x90] sm:$0x1f]
  %v33 = vld [vmem:[%s0 + $0x98] sm:$0x1f]
  %v34 = vld [vmem:[%s0 + $0xa0] sm:$0x1f]
  %v35 = vld [vmem:[%s0 + $0xa8] sm:$0x1f]
  %v36 = vld [vmem:[%s0 + $0xb0] sm:$0x1f]
  %v37 = vld [vmem:[%s0 + $0xb8] sm:$0x1f]
  %v38 = vld [vmem:[%s0 + $0xc0] sm:$0x1f]
  %v39 = vld [vmem:[%s0 + $0xc8] sm:$0x1f]
  %v40 = vld [vmem:[%s0 + $0xd0] sm:$0x1f]
  %v41 = vld [vmem:[%s0 + $0xd8] sm:$0x1f]
  %v42 = vld [vmem:[%s0 + $0xe0] sm:$0x1f]
  %v43 = vld [vmem:[%s0 + $0xe8] sm:$0x1f]
  %v44 = vld [vmem:[%s0 + $0xf0] sm:$0x1f]
  %v45 = vld [vmem:[%s0 + $0xf8] sm:$0x1f]
  %78 = vrot.lane.b32.xlu0 %v14, 118
  %v79 = vpop.permute.xlu0 %78
  %80 = vrot.lane.b32.xlu0 %v15, 118
  %v81 = vpop.permute.xlu0 %80
  %82 = vrot.lane.b32.xlu0 %v16, 118
  %v83 = vpop.permute.xlu0 %82
  %84 = vrot.lane.b32.xlu0 %v17, 118
  %v85 = vpop.permute.xlu0 %84
  %86 = vrot.lane.b32.xlu0 %v18, 118
  %v87 = vpop.permute.xlu0 %86
  %88 = vrot.lane.b32.xlu0 %v19, 118
  %v89 = vpop.permute.xlu0 %88
  %90 = vrot.lane.b32.xlu0 %v20, 118
  %v91 = vpop.permute.xlu0 %90
  %92 = vrot.lane.b32.xlu0 %v21, 118
  %v93 = vpop.permute.xlu0 %92
  %94 = vrot.lane.b32.xlu0 %v22, 118
  %v95 = vpop.permute.xlu0 %94
  %96 = vrot.lane.b32.xlu0 %v23, 118
  %v97 = vpop.permute.xlu0 %96
  %98 = vrot.lane.b32.xlu0 %v24, 118
  %v99 = vpop.permute.xlu0 %98
  %100 = vrot.lane.b32.xlu0 %v25, 118
  %v101 = vpop.permute.xlu0 %100
  %102 = vrot.lane.b32.xlu0 %v26, 118
  %v103 = vpop.permute.xlu0 %102
  %104 = vrot.lane.b32.xlu0 %v27, 118
  %v105 = vpop.permute.xlu0 %104
  %106 = vrot.lane.b32.xlu0 %v28, 118
  %v107 = vpop.permute.xlu0 %106
  %108 = vrot.lane.b32.xlu0 %v29, 118
  %v109 = vpop.permute.xlu0 %108
  %110 = vrot.lane.b32.xlu0 %v30, 118
  %v111 = vpop.permute.xlu0 %110
  %112 = vrot.lane.b32.xlu0 %v31, 118
  %v113 = vpop.permute.xlu0 %112
  %114 = vrot.lane.b32.xlu0 %v32, 118
  %v115 = vpop.permute.xlu0 %114
  %116 = vrot.lane.b32.xlu0 %v33, 118
  %v117 = vpop.permute.xlu0 %116
  %118 = vrot.lane.b32.xlu0 %v34, 118
  %v119 = vpop.permute.xlu0 %118
  %120 = vrot.lane.b32.xlu0 %v35, 118
  %v121 = vpop.permute.xlu0 %120
  %122 = vrot.lane.b32.xlu0 %v36, 118
  %v123 = vpop.permute.xlu0 %122
  %124 = vrot.lane.b32.xlu0 %v37, 118
  %v125 = vpop.permute.xlu0 %124
  %126 = vrot.lane.b32.xlu0 %v38, 118
  %v127 = vpop.permute.xlu0 %126
  %128 = vrot.lane.b32.xlu0 %v39, 118
  %v129 = vpop.permute.xlu0 %128
  %130 = vrot.lane.b32.xlu0 %v40, 118
  %v131 = vpop.permute.xlu0 %130
  %132 = vrot.lane.b32.xlu0 %v41, 118
  %v133 = vpop.permute.xlu0 %132
  %134 = vrot.lane.b32.xlu0 %v42, 118
  %v135 = vpop.permute.xlu0 %134
  %136 = vrot.lane.b32.xlu0 %v43, 118
  %v137 = vpop.permute.xlu0 %136
  %138 = vrot.lane.b32.xlu0 %v44, 118
  %v139 = vpop.permute.xlu0 %138
  %140 = vrot.lane.b32.xlu0 %v45, 118
  %v141 = vpop.permute.xlu0 %140
  %v174 = vadd.f32 %v14, %v79
  %v175 = vadd.f32 %v15, %v81
  %v176 = vadd.f32 %v16, %v83
  %v177 = vadd.f32 %v17, %v85
  %v178 = vadd.f32 %v18, %v87
  %v179 = vadd.f32 %v19, %v89
  %v180 = vadd.f32 %v20, %v91
  %v181 = vadd.f32 %v21, %v93
  %v182 = vadd.f32 %v22, %v95
  %v183 = vadd.f32 %v23, %v97
  %v184 = vadd.f32 %v24, %v99
  %v185 = vadd.f32 %v25, %v101
  %v186 = vadd.f32 %v26, %v103
  %v187 = vadd.f32 %v27, %v105
  %v188 = vadd.f32 %v28, %v107
  %v189 = vadd.f32 %v29, %v109
  %v190 = vadd.f32 %v30, %v111
  %v191 = vadd.f32 %v31, %v113
  %v192 = vadd.f32 %v32, %v115
  %v193 = vadd.f32 %v33, %v117
  %v194 = vadd.f32 %v34, %v119
  %v195 = vadd.f32 %v35, %v121
  %v196 = vadd.f32 %v36, %v123
  %v197 = vadd.f32 %v37, %v125
  %v198 = vadd.f32 %v38, %v127
  %v199 = vadd.f32 %v39, %v129
  %v200 = vadd.f32 %v40, %v131
  %v201 = vadd.f32 %v41, %v133
  %v202 = vadd.f32 %v42, %v135
  %v203 = vadd.f32 %v43, %v137
  %v204 = vadd.f32 %v44, %v139
  %v205 = vadd.f32 %v45, %v141
  %238 = vrot.lane.b32.xlu0 %v174, 127
  %v239 = vpop.permute.xlu0 %238
  %240 = vrot.lane.b32.xlu0 %v175, 127
  %v241 = vpop.permute.xlu0 %240
  %242 = vrot.lane.b32.xlu0 %v176, 127
  %v243 = vpop.permute.xlu0 %242
  %244 = vrot.lane.b32.xlu0 %v177, 127
  %v245 = vpop.permute.xlu0 %244
  %246 = vrot.lane.b32.xlu0 %v178, 127
  %v247 = vpop.permute.xlu0 %246
  %248 = vrot.lane.b32.xlu0 %v179, 127
  %v249 = vpop.permute.xlu0 %248
  %250 = vrot.lane.b32.xlu0 %v180, 127
  %v251 = vpop.permute.xlu0 %250
  %252 = vrot.lane.b32.xlu0 %v181, 127
  %v253 = vpop.permute.xlu0 %252
  %254 = vrot.lane.b32.xlu0 %v182, 127
  %v255 = vpop.permute.xlu0 %254
  %256 = vrot.lane.b32.xlu0 %v183, 127
  %v257 = vpop.permute.xlu0 %256
  %258 = vrot.lane.b32.xlu0 %v184, 127
  %v259 = vpop.permute.xlu0 %258
  %260 = vrot.lane.b32.xlu0 %v185, 127
  %v261 = vpop.permute.xlu0 %260
  %262 = vrot.lane.b32.xlu0 %v186, 127
  %v263 = vpop.permute.xlu0 %262
  %264 = vrot.lane.b32.xlu0 %v187, 127
  %v265 = vpop.permute.xlu0 %264
  %266 = vrot.lane.b32.xlu0 %v188, 127
  %v267 = vpop.permute.xlu0 %266
  %268 = vrot.lane.b32.xlu0 %v189, 127
  %v269 = vpop.permute.xlu0 %268
  %270 = vrot.lane.b32.xlu0 %v190, 127
  %v271 = vpop.permute.xlu0 %270
  %272 = vrot.lane.b32.xlu0 %v191, 127
  %v273 = vpop.permute.xlu0 %272
  %274 = vrot.lane.b32.xlu0 %v192, 127
  %v275 = vpop.permute.xlu0 %274
  %276 = vrot.lane.b32.xlu0 %v193, 127
  %v277 = vpop.permute.xlu0 %276
  %278 = vrot.lane.b32.xlu0 %v194, 127
  %v279 = vpop.permute.xlu0 %278
  %280 = vrot.lane.b32.xlu0 %v195, 127
  %v281 = vpop.permute.xlu0 %280
  %282 = vrot.lane.b32.xlu0 %v196, 127
  %v283 = vpop.permute.xlu0 %282
  %284 = vrot.lane.b32.xlu0 %v197, 127
  %v285 = vpop.permute.xlu0 %284
  %286 = vrot.lane.b32.xlu0 %v198, 127
  %v287 = vpop.permute.xlu0 %286
  %288 = vrot.lane.b32.xlu0 %v199, 127
  %v289 = vpop.permute.xlu0 %288
  %290 = vrot.lane.b32.xlu0 %v200, 127
  %v291 = vpop.permute.xlu0 %290
  %292 = vrot.lane.b32.xlu0 %v201, 127
  %v293 = vpop.permute.xlu0 %292
  %294 = vrot.lane.b32.xlu0 %v202, 127
  %v295 = vpop.permute.xlu0 %294
  %296 = vrot.lane.b32.xlu0 %v203, 127
  %v297 = vpop.permute.xlu0 %296
  %298 = vrot.lane.b32.xlu0 %v204, 127
  %v299 = vpop.permute.xlu0 %298
  %300 = vrot.lane.b32.xlu0 %v205, 127
  %v301 = vpop.permute.xlu0 %300
  %v334 = vadd.f32 %v174, %v239
  %v335 = vadd.f32 %v175, %v241
  %v336 = vadd.f32 %v176, %v243
  %v337 = vadd.f32 %v177, %v245
  %v338 = vadd.f32 %v178, %v247
  %v339 = vadd.f32 %v179, %v249
  %v340 = vadd.f32 %v180, %v251
  %v341 = vadd.f32 %v181, %v253
  %v342 = vadd.f32 %v182, %v255
  %v343 = vadd.f32 %v183, %v257
  %v344 = vadd.f32 %v184, %v259
  %v345 = vadd.f32 %v185, %v261
  %v346 = vadd.f32 %v186, %v263
  %v347 = vadd.f32 %v187, %v265
  %v348 = vadd.f32 %v188, %v267
  %v349 = vadd.f32 %v189, %v269
  %v350 = vadd.f32 %v190, %v271
  %v351 = vadd.f32 %v191, %v273
  %v352 = vadd.f32 %v192, %v275
  %v353 = vadd.f32 %v193, %v277
  %v354 = vadd.f32 %v194, %v279
  %v355 = vadd.f32 %v195, %v281
  %v356 = vadd.f32 %v196, %v283
  %v357 = vadd.f32 %v197, %v285
  %v358 = vadd.f32 %v198, %v287
  %v359 = vadd.f32 %v199, %v289
  %v360 = vadd.f32 %v200, %v291
  %v361 = vadd.f32 %v201, %v293
  %v362 = vadd.f32 %v202, %v295
  %v363 = vadd.f32 %v203, %v297
  %v364 = vadd.f32 %v204, %v299
  %v365 = vadd.f32 %v205, %v301
  %398 = vrot.lane.b32.xlu0 %v334, 127
  %v399 = vpop.permute.xlu0 %398
  %400 = vrot.lane.b32.xlu0 %v335, 127
  %v401 = vpop.permute.xlu0 %400
  %402 = vrot.lane.b32.xlu0 %v336, 127
  %v403 = vpop.permute.xlu0 %402
  %404 = vrot.lane.b32.xlu0 %v337, 127
  %v405 = vpop.permute.xlu0 %404
  %406 = vrot.lane.b32.xlu0 %v338, 127
  %v407 = vpop.permute.xlu0 %406
  %408 = vrot.lane.b32.xlu0 %v339, 127
  %v409 = vpop.permute.xlu0 %408
  %410 = vrot.lane.b32.xlu0 %v340, 127
  %v411 = vpop.permute.xlu0 %410
  %412 = vrot.lane.b32.xlu0 %v341, 127
  %v413 = vpop.permute.xlu0 %412
  %414 = vrot.lane.b32.xlu0 %v342, 127
  %v415 = vpop.permute.xlu0 %414
  %416 = vrot.lane.b32.xlu0 %v343, 127
  %v417 = vpop.permute.xlu0 %416
  %418 = vrot.lane.b32.xlu0 %v344, 127
  %v419 = vpop.permute.xlu0 %418
  %420 = vrot.lane.b32.xlu0 %v345, 127
  %v421 = vpop.permute.xlu0 %420
  %422 = vrot.lane.b32.xlu0 %v346, 127
  %v423 = vpop.permute.xlu0 %422
  %424 = vrot.lane.b32.xlu0 %v347, 127
  %v425 = vpop.permute.xlu0 %424
  %426 = vrot.lane.b32.xlu0 %v348, 127
  %v427 = vpop.permute.xlu0 %426
  %428 = vrot.lane.b32.xlu0 %v349, 127
  %v429 = vpop.permute.xlu0 %428
  %430 = vrot.lane.b32.xlu0 %v350, 127
  %v431 = vpop.permute.xlu0 %430
  %432 = vrot.lane.b32.xlu0 %v351, 127
  %v433 = vpop.permute.xlu0 %432
  %434 = vrot.lane.b32.xlu0 %v352, 127
  %v435 = vpop.permute.xlu0 %434
  %436 = vrot.lane.b32.xlu0 %v353, 127
  %v437 = vpop.permute.xlu0 %436
  %438 = vrot.lane.b32.xlu0 %v354, 127
  %v439 = vpop.permute.xlu0 %438
  %440 = vrot.lane.b32.xlu0 %v355, 127
  %v441 = vpop.permute.xlu0 %440
  %442 = vrot.lane.b32.xlu0 %v356, 127
  %v443 = vpop.permute.xlu0 %442
  %444 = vrot.lane.b32.xlu0 %v357, 127
  %v445 = vpop.permute.xlu0 %444
  %446 = vrot.lane.b32.xlu0 %v358, 127
  %v447 = vpop.permute.xlu0 %446
  %448 = vrot.lane.b32.xlu0 %v359, 127
  %v449 = vpop.permute.xlu0 %448
  %450 = vrot.lane.b32.xlu0 %v360, 127
  %v451 = vpop.permute.xlu0 %450
  %452 = vrot.lane.b32.xlu0 %v361, 127
  %v453 = vpop.permute.xlu0 %452
  %454 = vrot.lane.b32.xlu0 %v362, 127
  %v455 = vpop.permute.xlu0 %454
  %456 = vrot.lane.b32.xlu0 %v363, 127
  %v457 = vpop.permute.xlu0 %456
  %458 = vrot.lane.b32.xlu0 %v364, 127
  %v459 = vpop.permute.xlu0 %458
  %460 = vrot.lane.b32.xlu0 %v365, 127
  %v461 = vpop.permute.xlu0 %460
  %494 = vrot.lane.b32.xlu0 %v334, 126
  %v495 = vpop.permute.xlu0 %494
  %496 = vrot.lane.b32.xlu0 %v335, 126
  %v497 = vpop.permute.xlu0 %496
  %498 = vrot.lane.b32.xlu0 %v336, 126
  %v499 = vpop.permute.xlu0 %498
  %500 = vrot.lane.b32.xlu0 %v337, 126
  %v501 = vpop.permute.xlu0 %500
  %502 = vrot.lane.b32.xlu0 %v338, 126
  %v503 = vpop.permute.xlu0 %502
  %504 = vrot.lane.b32.xlu0 %v339, 126
  %v505 = vpop.permute.xlu0 %504
  %506 = vrot.lane.b32.xlu0 %v340, 126
  %v507 = vpop.permute.xlu0 %506
  %508 = vrot.lane.b32.xlu0 %v341, 126
  %v509 = vpop.permute.xlu0 %508
  %510 = vrot.lane.b32.xlu0 %v342, 126
  %v511 = vpop.permute.xlu0 %510
  %512 = vrot.lane.b32.xlu0 %v343, 126
  %v513 = vpop.permute.xlu0 %512
  %514 = vrot.lane.b32.xlu0 %v344, 126
  %v515 = vpop.permute.xlu0 %514
  %516 = vrot.lane.b32.xlu0 %v345, 126
  %v517 = vpop.permute.xlu0 %516
  %518 = vrot.lane.b32.xlu0 %v346, 126
  %v519 = vpop.permute.xlu0 %518
  %520 = vrot.lane.b32.xlu0 %v347, 126
  %v521 = vpop.permute.xlu0 %520
  %522 = vrot.lane.b32.xlu0 %v348, 126
  %v523 = vpop.permute.xlu0 %522
  %524 = vrot.lane.b32.xlu0 %v349, 126
  %v525 = vpop.permute.xlu0 %524
  %526 = vrot.lane.b32.xlu0 %v350, 126
  %v527 = vpop.permute.xlu0 %526
  %528 = vrot.lane.b32.xlu0 %v351, 126
  %v529 = vpop.permute.xlu0 %528
  %530 = vrot.lane.b32.xlu0 %v352, 126
  %v531 = vpop.permute.xlu0 %530
  %532 = vrot.lane.b32.xlu0 %v353, 126
  %v533 = vpop.permute.xlu0 %532
  %534 = vrot.lane.b32.xlu0 %v354, 126
  %v535 = vpop.permute.xlu0 %534
  %536 = vrot.lane.b32.xlu0 %v355, 126
  %v537 = vpop.permute.xlu0 %536
  %538 = vrot.lane.b32.xlu0 %v356, 126
  %v539 = vpop.permute.xlu0 %538
  %540 = vrot.lane.b32.xlu0 %v357, 126
  %v541 = vpop.permute.xlu0 %540
  %542 = vrot.lane.b32.xlu0 %v358, 126
  %v543 = vpop.permute.xlu0 %542
  %544 = vrot.lane.b32.xlu0 %v359, 126
  %v545 = vpop.permute.xlu0 %544
  %546 = vrot.lane.b32.xlu0 %v360, 126
  %v547 = vpop.permute.xlu0 %546
  %548 = vrot.lane.b32.xlu0 %v361, 126
  %v549 = vpop.permute.xlu0 %548
  %550 = vrot.lane.b32.xlu0 %v362, 126
  %v551 = vpop.permute.xlu0 %550
  %552 = vrot.lane.b32.xlu0 %v363, 126
  %v553 = vpop.permute.xlu0 %552
  %554 = vrot.lane.b32.xlu0 %v364, 126
  %v555 = vpop.permute.xlu0 %554
  %556 = vrot.lane.b32.xlu0 %v365, 126
  %v557 = vpop.permute.xlu0 %556
  %590 = vrot.lane.b32.xlu0 %v334, 125
  %v591 = vpop.permute.xlu0 %590
  %592 = vrot.lane.b32.xlu0 %v335, 125
  %v593 = vpop.permute.xlu0 %592
  %594 = vrot.lane.b32.xlu0 %v336, 125
  %v595 = vpop.permute.xlu0 %594
  %596 = vrot.lane.b32.xlu0 %v337, 125
  %v597 = vpop.permute.xlu0 %596
  %598 = vrot.lane.b32.xlu0 %v338, 125
  %v599 = vpop.permute.xlu0 %598
  %600 = vrot.lane.b32.xlu0 %v339, 125
  %v601 = vpop.permute.xlu0 %600
  %602 = vrot.lane.b32.xlu0 %v340, 125
  %v603 = vpop.permute.xlu0 %602
  %604 = vrot.lane.b32.xlu0 %v341, 125
  %v605 = vpop.permute.xlu0 %604
  %606 = vrot.lane.b32.xlu0 %v342, 125
  %v607 = vpop.permute.xlu0 %606
  %608 = vrot.lane.b32.xlu0 %v343, 125
  %v609 = vpop.permute.xlu0 %608
  %610 = vrot.lane.b32.xlu0 %v344, 125
  %v611 = vpop.permute.xlu0 %610
  %612 = vrot.lane.b32.xlu0 %v345, 125
  %v613 = vpop.permute.xlu0 %612
  %614 = vrot.lane.b32.xlu0 %v346, 125
  %v615 = vpop.permute.xlu0 %614
  %616 = vrot.lane.b32.xlu0 %v347, 125
  %v617 = vpop.permute.xlu0 %616
  %618 = vrot.lane.b32.xlu0 %v348, 125
  %v619 = vpop.permute.xlu0 %618
  %620 = vrot.lane.b32.xlu0 %v349, 125
  %v621 = vpop.permute.xlu0 %620
  %622 = vrot.lane.b32.xlu0 %v350, 125
  %v623 = vpop.permute.xlu0 %622
  %624 = vrot.lane.b32.xlu0 %v351, 125
  %v625 = vpop.permute.xlu0 %624
  %626 = vrot.lane.b32.xlu0 %v352, 125
  %v627 = vpop.permute.xlu0 %626
  %628 = vrot.lane.b32.xlu0 %v353, 125
  %v629 = vpop.permute.xlu0 %628
  %630 = vrot.lane.b32.xlu0 %v354, 125
  %v631 = vpop.permute.xlu0 %630
  %632 = vrot.lane.b32.xlu0 %v355, 125
  %v633 = vpop.permute.xlu0 %632
  %634 = vrot.lane.b32.xlu0 %v356, 125
  %v635 = vpop.permute.xlu0 %634
  %636 = vrot.lane.b32.xlu0 %v357, 125
  %v637 = vpop.permute.xlu0 %636
  %638 = vrot.lane.b32.xlu0 %v358, 125
  %v639 = vpop.permute.xlu0 %638
  %640 = vrot.lane.b32.xlu0 %v359, 125
  %v641 = vpop.permute.xlu0 %640
  %642 = vrot.lane.b32.xlu0 %v360, 125
  %v643 = vpop.permute.xlu0 %642
  %644 = vrot.lane.b32.xlu0 %v361, 125
  %v645 = vpop.permute.xlu0 %644
  %646 = vrot.lane.b32.xlu0 %v362, 125
  %v647 = vpop.permute.xlu0 %646
  %648 = vrot.lane.b32.xlu0 %v363, 125
  %v649 = vpop.permute.xlu0 %648
  %650 = vrot.lane.b32.xlu0 %v364, 125
  %v651 = vpop.permute.xlu0 %650
  %652 = vrot.lane.b32.xlu0 %v365, 125
  %v653 = vpop.permute.xlu0 %652
  %686 = vrot.lane.b32.xlu0 %v334, 124
  %v687 = vpop.permute.xlu0 %686
  %688 = vrot.lane.b32.xlu0 %v335, 124
  %v689 = vpop.permute.xlu0 %688
  %690 = vrot.lane.b32.xlu0 %v336, 124
  %v691 = vpop.permute.xlu0 %690
  %692 = vrot.lane.b32.xlu0 %v337, 124
  %v693 = vpop.permute.xlu0 %692
  %694 = vrot.lane.b32.xlu0 %v338, 124
  %v695 = vpop.permute.xlu0 %694
  %696 = vrot.lane.b32.xlu0 %v339, 124
  %v697 = vpop.permute.xlu0 %696
  %698 = vrot.lane.b32.xlu0 %v340, 124
  %v699 = vpop.permute.xlu0 %698
  %700 = vrot.lane.b32.xlu0 %v341, 124
  %v701 = vpop.permute.xlu0 %700
  %702 = vrot.lane.b32.xlu0 %v342, 124
  %v703 = vpop.permute.xlu0 %702
  %704 = vrot.lane.b32.xlu0 %v343, 124
  %v705 = vpop.permute.xlu0 %704
  %706 = vrot.lane.b32.xlu0 %v344, 124
  %v707 = vpop.permute.xlu0 %706
  %708 = vrot.lane.b32.xlu0 %v345, 124
  %v709 = vpop.permute.xlu0 %708
  %710 = vrot.lane.b32.xlu0 %v346, 124
  %v711 = vpop.permute.xlu0 %710
  %712 = vrot.lane.b32.xlu0 %v347, 124
  %v713 = vpop.permute.xlu0 %712
  %714 = vrot.lane.b32.xlu0 %v348, 124
  %v715 = vpop.permute.xlu0 %714
  %716 = vrot.lane.b32.xlu0 %v349, 124
  %v717 = vpop.permute.xlu0 %716
  %718 = vrot.lane.b32.xlu0 %v350, 124
  %v719 = vpop.permute.xlu0 %718
  %720 = vrot.lane.b32.xlu0 %v351, 124
  %v721 = vpop.permute.xlu0 %720
  %722 = vrot.lane.b32.xlu0 %v352, 124
  %v723 = vpop.permute.xlu0 %722
  %724 = vrot.lane.b32.xlu0 %v353, 124
  %v725 = vpop.permute.xlu0 %724
  %726 = vrot.lane.b32.xlu0 %v354, 124
  %v727 = vpop.permute.xlu0 %726
  %728 = vrot.lane.b32.xlu0 %v355, 124
  %v729 = vpop.permute.xlu0 %728
  %730 = vrot.lane.b32.xlu0 %v356, 124
  %v731 = vpop.permute.xlu0 %730
  %732 = vrot.lane.b32.xlu0 %v357, 124
  %v733 = vpop.permute.xlu0 %732
  %734 = vrot.lane.b32.xlu0 %v358, 124
  %v735 = vpop.permute.xlu0 %734
  %736 = vrot.lane.b32.xlu0 %v359, 124
  %v737 = vpop.permute.xlu0 %736
  %738 = vrot.lane.b32.xlu0 %v360, 124
  %v739 = vpop.permute.xlu0 %738
  %740 = vrot.lane.b32.xlu0 %v361, 124
  %v741 = vpop.permute.xlu0 %740
  %742 = vrot.lane.b32.xlu0 %v362, 124
  %v743 = vpop.permute.xlu0 %742
  %744 = vrot.lane.b32.xlu0 %v363, 124
  %v745 = vpop.permute.xlu0 %744
  %746 = vrot.lane.b32.xlu0 %v364, 124
  %v747 = vpop.permute.xlu0 %746
  %748 = vrot.lane.b32.xlu0 %v365, 124
  %v749 = vpop.permute.xlu0 %748
  %vm782 = vcmask 7168
  %v783 = vsel %vm782, %v334, %v399
  %v784 = vsel %vm782, %v335, %v401
  %v785 = vsel %vm782, %v336, %v403
  %v786 = vsel %vm782, %v337, %v405
  %v787 = vsel %vm782, %v338, %v407
  %v788 = vsel %vm782, %v339, %v409
  %v789 = vsel %vm782, %v340, %v411
  %v790 = vsel %vm782, %v341, %v413
  %v791 = vsel %vm782, %v342, %v415
  %v792 = vsel %vm782, %v343, %v417
  %v793 = vsel %vm782, %v344, %v419
  %v794 = vsel %vm782, %v345, %v421
  %v795 = vsel %vm782, %v346, %v423
  %v796 = vsel %vm782, %v347, %v425
  %v797 = vsel %vm782, %v348, %v427
  %v798 = vsel %vm782, %v349, %v429
  %v799 = vsel %vm782, %v350, %v431
  %v800 = vsel %vm782, %v351, %v433
  %v801 = vsel %vm782, %v352, %v435
  %v802 = vsel %vm782, %v353, %v437
  %v803 = vsel %vm782, %v354, %v439
  %v804 = vsel %vm782, %v355, %v441
  %v805 = vsel %vm782, %v356, %v443
  %v806 = vsel %vm782, %v357, %v445
  %v807 = vsel %vm782, %v358, %v447
  %v808 = vsel %vm782, %v359, %v449
  %v809 = vsel %vm782, %v360, %v451
  %v810 = vsel %vm782, %v361, %v453
  %v811 = vsel %vm782, %v362, %v455
  %v812 = vsel %vm782, %v363, %v457
  %v813 = vsel %vm782, %v364, %v459
  %v814 = vsel %vm782, %v365, %v461
  %vm815 = vcmask 15360
  %v816 = vsel %vm815, %v783, %v495
  %v817 = vsel %vm815, %v784, %v497
  %v818 = vsel %vm815, %v785, %v499
  %v819 = vsel %vm815, %v786, %v501
  %v820 = vsel %vm815, %v787, %v503
  %v821 = vsel %vm815, %v788, %v505
  %v822 = vsel %vm815, %v789, %v507
  %v823 = vsel %vm815, %v790, %v509
  %v824 = vsel %vm815, %v791, %v511
  %v825 = vsel %vm815, %v792, %v513
  %v826 = vsel %vm815, %v793, %v515
  %v827 = vsel %vm815, %v794, %v517
  %v828 = vsel %vm815, %v795, %v519
  %v829 = vsel %vm815, %v796, %v521
  %v830 = vsel %vm815, %v797, %v523
  %v831 = vsel %vm815, %v798, %v525
  %v832 = vsel %vm815, %v799, %v527
  %v833 = vsel %vm815, %v800, %v529
  %v834 = vsel %vm815, %v801, %v531
  %v835 = vsel %vm815, %v802, %v533
  %v836 = vsel %vm815, %v803, %v535
  %v837 = vsel %vm815, %v804, %v537
  %v838 = vsel %vm815, %v805, %v539
  %v839 = vsel %vm815, %v806, %v541
  %v840 = vsel %vm815, %v807, %v543
  %v841 = vsel %vm815, %v808, %v545
  %v842 = vsel %vm815, %v809, %v547
  %v843 = vsel %vm815, %v810, %v549
  %v844 = vsel %vm815, %v811, %v551
  %v845 = vsel %vm815, %v812, %v553
  %v846 = vsel %vm815, %v813, %v555
  %v847 = vsel %vm815, %v814, %v557
  %vm848 = vcmask 23552
  %v849 = vsel %vm848, %v816, %v591
  %v850 = vsel %vm848, %v817, %v593
  %v851 = vsel %vm848, %v818, %v595
  %v852 = vsel %vm848, %v819, %v597
  %v853 = vsel %vm848, %v820, %v599
  %v854 = vsel %vm848, %v821, %v601
  %v855 = vsel %vm848, %v822, %v603
  %v856 = vsel %vm848, %v823, %v605
  %v857 = vsel %vm848, %v824, %v607
  %v858 = vsel %vm848, %v825, %v609
  %v859 = vsel %vm848, %v826, %v611
  %v860 = vsel %vm848, %v827, %v613
  %v861 = vsel %vm848, %v828, %v615
  %v862 = vsel %vm848, %v829, %v617
  %v863 = vsel %vm848, %v830, %v619
  %v864 = vsel %vm848, %v831, %v621
  %v865 = vsel %vm848, %v832, %v623
  %v866 = vsel %vm848, %v833, %v625
  %v867 = vsel %vm848, %v834, %v627
  %v868 = vsel %vm848, %v835, %v629
  %v869 = vsel %vm848, %v836, %v631
  %v870 = vsel %vm848, %v837, %v633
  %v871 = vsel %vm848, %v838, %v635
  %v872 = vsel %vm848, %v839, %v637
  %v873 = vsel %vm848, %v840, %v639
  %v874 = vsel %vm848, %v841, %v641
  %v875 = vsel %vm848, %v842, %v643
  %v876 = vsel %vm848, %v843, %v645
  %v877 = vsel %vm848, %v844, %v647
  %v878 = vsel %vm848, %v845, %v649
  %v879 = vsel %vm848, %v846, %v651
  %v880 = vsel %vm848, %v847, %v653
  %vm881 = vcmask 31744
  %v882 = vsel %vm881, %v849, %v687
  %v883 = vsel %vm881, %v850, %v689
  %v884 = vsel %vm881, %v851, %v691
  %v885 = vsel %vm881, %v852, %v693
  %v886 = vsel %vm881, %v853, %v695
  %v887 = vsel %vm881, %v854, %v697
  %v888 = vsel %vm881, %v855, %v699
  %v889 = vsel %vm881, %v856, %v701
  %v890 = vsel %vm881, %v857, %v703
  %v891 = vsel %vm881, %v858, %v705
  %v892 = vsel %vm881, %v859, %v707
  %v893 = vsel %vm881, %v860, %v709
  %v894 = vsel %vm881, %v861, %v711
  %v895 = vsel %vm881, %v862, %v713
  %v896 = vsel %vm881, %v863, %v715
  %v897 = vsel %vm881, %v864, %v717
  %v898 = vsel %vm881, %v865, %v719
  %v899 = vsel %vm881, %v866, %v721
  %v900 = vsel %vm881, %v867, %v723
  %v901 = vsel %vm881, %v868, %v725
  %v902 = vsel %vm881, %v869, %v727
  %v903 = vsel %vm881, %v870, %v729
  %v904 = vsel %vm881, %v871, %v731
  %v905 = vsel %vm881, %v872, %v733
  %v906 = vsel %vm881, %v873, %v735
  %v907 = vsel %vm881, %v874, %v737
  %v908 = vsel %vm881, %v875, %v739
  %v909 = vsel %vm881, %v876, %v741
  %v910 = vsel %vm881, %v877, %v743
  %v911 = vsel %vm881, %v878, %v745
  %v912 = vsel %vm881, %v879, %v747
  %v913 = vsel %vm881, %v880, %v749
  %v914 = vld [vmem:[%s1] sm:$0x1f]
  %v915 = vld [vmem:[%s1 + $0x8] sm:$0x1f]
  %v916 = vld [vmem:[%s1 + $0x10] sm:$0x1f]
  %v917 = vld [vmem:[%s1 + $0x18] sm:$0x1f]
  %v918 = vld [vmem:[%s1 + $0x20] sm:$0x1f]
  %v919 = vld [vmem:[%s1 + $0x28] sm:$0x1f]
  %v920 = vld [vmem:[%s1 + $0x30] sm:$0x1f]
  %v921 = vld [vmem:[%s1 + $0x38] sm:$0x1f]
  %v922 = vld [vmem:[%s1 + $0x40] sm:$0x1f]
  %v923 = vld [vmem:[%s1 + $0x48] sm:$0x1f]
  %v924 = vld [vmem:[%s1 + $0x50] sm:$0x1f]
  %v925 = vld [vmem:[%s1 + $0x58] sm:$0x1f]
  %v926 = vld [vmem:[%s1 + $0x60] sm:$0x1f]
  %v927 = vld [vmem:[%s1 + $0x68] sm:$0x1f]
  %v928 = vld [vmem:[%s1 + $0x70] sm:$0x1f]
  %v929 = vld [vmem:[%s1 + $0x78] sm:$0x1f]
  %v930 = vld [vmem:[%s1 + $0x80] sm:$0x1f]
  %v931 = vld [vmem:[%s1 + $0x88] sm:$0x1f]
  %v932 = vld [vmem:[%s1 + $0x90] sm:$0x1f]
  %v933 = vld [vmem:[%s1 + $0x98] sm:$0x1f]
  %v934 = vld [vmem:[%s1 + $0xa0] sm:$0x1f]
  %v935 = vld [vmem:[%s1 + $0xa8] sm:$0x1f]
  %v936 = vld [vmem:[%s1 + $0xb0] sm:$0x1f]
  %v937 = vld [vmem:[%s1 + $0xb8] sm:$0x1f]
  %v938 = vld [vmem:[%s1 + $0xc0] sm:$0x1f]
  %v939 = vld [vmem:[%s1 + $0xc8] sm:$0x1f]
  %v940 = vld [vmem:[%s1 + $0xd0] sm:$0x1f]
  %v941 = vld [vmem:[%s1 + $0xd8] sm:$0x1f]
  %v942 = vld [vmem:[%s1 + $0xe0] sm:$0x1f]
  %v943 = vld [vmem:[%s1 + $0xe8] sm:$0x1f]
  %v944 = vld [vmem:[%s1 + $0xf0] sm:$0x1f]
  %v945 = vld [vmem:[%s1 + $0xf8] sm:$0x1f]
  %947 = vset.pattern.permute.xlu0 0
  %948 = vperm.xlu0 %947, %v914
  %v949 = vpop.permute.xlu0 %948
  %952 = vset.pattern.permute.xlu0 0
  %953 = vperm.xlu0 %952, %v915
  %v954 = vpop.permute.xlu0 %953
  %957 = vset.pattern.permute.xlu0 0
  %958 = vperm.xlu0 %957, %v916
  %v959 = vpop.permute.xlu0 %958
  %962 = vset.pattern.permute.xlu0 0
  %963 = vperm.xlu0 %962, %v917
  %v964 = vpop.permute.xlu0 %963
  %967 = vset.pattern.permute.xlu0 0
  %968 = vperm.xlu0 %967, %v918
  %v969 = vpop.permute.xlu0 %968
  %972 = vset.pattern.permute.xlu0 0
  %973 = vperm.xlu0 %972, %v919
  %v974 = vpop.permute.xlu0 %973
  %977 = vset.pattern.permute.xlu0 0
  %978 = vperm.xlu0 %977, %v920
  %v979 = vpop.permute.xlu0 %978
  %982 = vset.pattern.permute.xlu0 0
  %983 = vperm.xlu0 %982, %v921
  %v984 = vpop.permute.xlu0 %983
  %987 = vset.pattern.permute.xlu0 0
  %988 = vperm.xlu0 %987, %v922
  %v989 = vpop.permute.xlu0 %988
  %992 = vset.pattern.permute.xlu0 0
  %993 = vperm.xlu0 %992, %v923
  %v994 = vpop.permute.xlu0 %993
  %997 = vset.pattern.permute.xlu0 0
  %998 = vperm.xlu0 %997, %v924
  %v999 = vpop.permute.xlu0 %998
  %1002 = vset.pattern.permute.xlu0 0
  %1003 = vperm.xlu0 %1002, %v925
  %v1004 = vpop.permute.xlu0 %1003
  %1007 = vset.pattern.permute.xlu0 0
  %1008 = vperm.xlu0 %1007, %v926
  %v1009 = vpop.permute.xlu0 %1008
  %1012 = vset.pattern.permute.xlu0 0
  %1013 = vperm.xlu0 %1012, %v927
  %v1014 = vpop.permute.xlu0 %1013
  %1017 = vset.pattern.permute.xlu0 0
  %1018 = vperm.xlu0 %1017, %v928
  %v1019 = vpop.permute.xlu0 %1018
  %1022 = vset.pattern.permute.xlu0 0
  %1023 = vperm.xlu0 %1022, %v929
  %v1024 = vpop.permute.xlu0 %1023
  %1027 = vset.pattern.permute.xlu0 0
  %1028 = vperm.xlu0 %1027, %v930
  %v1029 = vpop.permute.xlu0 %1028
  %1032 = vset.pattern.permute.xlu0 0
  %1033 = vperm.xlu0 %1032, %v931
  %v1034 = vpop.permute.xlu0 %1033
  %1037 = vset.pattern.permute.xlu0 0
  %1038 = vperm.xlu0 %1037, %v932
  %v1039 = vpop.permute.xlu0 %1038
  %1042 = vset.pattern.permute.xlu0 0
  %1043 = vperm.xlu0 %1042, %v933
  %v1044 = vpop.permute.xlu0 %1043
  %1047 = vset.pattern.permute.xlu0 0
  %1048 = vperm.xlu0 %1047, %v934
  %v1049 = vpop.permute.xlu0 %1048
  %1052 = vset.pattern.permute.xlu0 0
  %1053 = vperm.xlu0 %1052, %v935
  %v1054 = vpop.permute.xlu0 %1053
  %1057 = vset.pattern.permute.xlu0 0
  %1058 = vperm.xlu0 %1057, %v936
  %v1059 = vpop.permute.xlu0 %1058
  %1062 = vset.pattern.permute.xlu0 0
  %1063 = vperm.xlu0 %1062, %v937
  %v1064 = vpop.permute.xlu0 %1063
  %1067 = vset.pattern.permute.xlu0 0
  %1068 = vperm.xlu0 %1067, %v938
  %v1069 = vpop.permute.xlu0 %1068
  %1072 = vset.pattern.permute.xlu0 0
  %1073 = vperm.xlu0 %1072, %v939
  %v1074 = vpop.permute.xlu0 %1073
  %1077 = vset.pattern.permute.xlu0 0
  %1078 = vperm.xlu0 %1077, %v940
  %v1079 = vpop.permute.xlu0 %1078
  %1082 = vset.pattern.permute.xlu0 0
  %1083 = vperm.xlu0 %1082, %v941
  %v1084 = vpop.permute.xlu0 %1083
  %1087 = vset.pattern.permute.xlu0 0
  %1088 = vperm.xlu0 %1087, %v942
  %v1089 = vpop.permute.xlu0 %1088
  %1092 = vset.pattern.permute.xlu0 0
  %1093 = vperm.xlu0 %1092, %v943
  %v1094 = vpop.permute.xlu0 %1093
  %1097 = vset.pattern.permute.xlu0 0
  %1098 = vperm.xlu0 %1097, %v944
  %v1099 = vpop.permute.xlu0 %1098
  %1102 = vset.pattern.permute.xlu0 0
  %1103 = vperm.xlu0 %1102, %v945
  %v1104 = vpop.permute.xlu0 %1103
  %v1106 = vmul.f32 %v882, %v949
  %v1107 = vmul.f32 %v883, %v954
  %v1108 = vmul.f32 %v884, %v959
  %v1109 = vmul.f32 %v885, %v964
  %v1110 = vmul.f32 %v886, %v969
  %v1111 = vmul.f32 %v887, %v974
  %v1112 = vmul.f32 %v888, %v979
  %v1113 = vmul.f32 %v889, %v984
  %v1114 = vmul.f32 %v890, %v989
  %v1115 = vmul.f32 %v891, %v994
  %v1116 = vmul.f32 %v892, %v999
  %v1117 = vmul.f32 %v893, %v1004
  %v1118 = vmul.f32 %v894, %v1009
  %v1119 = vmul.f32 %v895, %v1014
  %v1120 = vmul.f32 %v896, %v1019
  %v1121 = vmul.f32 %v897, %v1024
  %v1122 = vmul.f32 %v898, %v1029
  %v1123 = vmul.f32 %v899, %v1034
  %v1124 = vmul.f32 %v900, %v1039
  %v1125 = vmul.f32 %v901, %v1044
  %v1126 = vmul.f32 %v902, %v1049
  %v1127 = vmul.f32 %v903, %v1054
  %v1128 = vmul.f32 %v904, %v1059
  %v1129 = vmul.f32 %v905, %v1064
  %v1130 = vmul.f32 %v906, %v1069
  %v1131 = vmul.f32 %v907, %v1074
  %v1132 = vmul.f32 %v908, %v1079
  %v1133 = vmul.f32 %v909, %v1084
  %v1134 = vmul.f32 %v910, %v1089
  %v1135 = vmul.f32 %v911, %v1094
  %v1136 = vmul.f32 %v912, %v1099
  %v1137 = vmul.f32 %v913, %v1104
  %v1138 = vld [vmem:[%s2] sm:$0x1f]
  %v1139 = vld [vmem:[%s2 + $0x8] sm:$0x1f]
  %v1140 = vld [vmem:[%s2 + $0x10] sm:$0x1f]
  %v1141 = vld [vmem:[%s2 + $0x18] sm:$0x1f]
  %v1142 = vld [vmem:[%s2 + $0x20] sm:$0x1f]
  %v1143 = vld [vmem:[%s2 + $0x28] sm:$0x1f]
  %v1144 = vld [vmem:[%s2 + $0x30] sm:$0x1f]
  %v1145 = vld [vmem:[%s2 + $0x38] sm:$0x1f]
  %v1146 = vld [vmem:[%s2 + $0x40] sm:$0x1f]
  %v1147 = vld [vmem:[%s2 + $0x48] sm:$0x1f]
  %v1148 = vld [vmem:[%s2 + $0x50] sm:$0x1f]
  %v1149 = vld [vmem:[%s2 + $0x58] sm:$0x1f]
  %v1150 = vld [vmem:[%s2 + $0x60] sm:$0x1f]
  %v1151 = vld [vmem:[%s2 + $0x68] sm:$0x1f]
  %v1152 = vld [vmem:[%s2 + $0x70] sm:$0x1f]
  %v1153 = vld [vmem:[%s2 + $0x78] sm:$0x1f]
  %v1154 = vld [vmem:[%s2 + $0x80] sm:$0x1f]
  %v1155 = vld [vmem:[%s2 + $0x88] sm:$0x1f]
  %v1156 = vld [vmem:[%s2 + $0x90] sm:$0x1f]
  %v1157 = vld [vmem:[%s2 + $0x98] sm:$0x1f]
  %v1158 = vld [vmem:[%s2 + $0xa0] sm:$0x1f]
  %v1159 = vld [vmem:[%s2 + $0xa8] sm:$0x1f]
  %v1160 = vld [vmem:[%s2 + $0xb0] sm:$0x1f]
  %v1161 = vld [vmem:[%s2 + $0xb8] sm:$0x1f]
  %v1162 = vld [vmem:[%s2 + $0xc0] sm:$0x1f]
  %v1163 = vld [vmem:[%s2 + $0xc8] sm:$0x1f]
  %v1164 = vld [vmem:[%s2 + $0xd0] sm:$0x1f]
  %v1165 = vld [vmem:[%s2 + $0xd8] sm:$0x1f]
  %v1166 = vld [vmem:[%s2 + $0xe0] sm:$0x1f]
  %v1167 = vld [vmem:[%s2 + $0xe8] sm:$0x1f]
  %v1168 = vld [vmem:[%s2 + $0xf0] sm:$0x1f]
  %v1169 = vld [vmem:[%s2 + $0xf8] sm:$0x1f]
  %1171 = vset.pattern.permute.xlu0 0
  %1172 = vperm.xlu0 %1171, %v1138
  %v1173 = vpop.permute.xlu0 %1172
  %1176 = vset.pattern.permute.xlu0 0
  %1177 = vperm.xlu0 %1176, %v1139
  %v1178 = vpop.permute.xlu0 %1177
  %1181 = vset.pattern.permute.xlu0 0
  %1182 = vperm.xlu0 %1181, %v1140
  %v1183 = vpop.permute.xlu0 %1182
  %1186 = vset.pattern.permute.xlu0 0
  %1187 = vperm.xlu0 %1186, %v1141
  %v1188 = vpop.permute.xlu0 %1187
  %1191 = vset.pattern.permute.xlu0 0
  %1192 = vperm.xlu0 %1191, %v1142
  %v1193 = vpop.permute.xlu0 %1192
  %1196 = vset.pattern.permute.xlu0 0
  %1197 = vperm.xlu0 %1196, %v1143
  %v1198 = vpop.permute.xlu0 %1197
  %1201 = vset.pattern.permute.xlu0 0
  %1202 = vperm.xlu0 %1201, %v1144
  %v1203 = vpop.permute.xlu0 %1202
  %1206 = vset.pattern.permute.xlu0 0
  %1207 = vperm.xlu0 %1206, %v1145
  %v1208 = vpop.permute.xlu0 %1207
  %1211 = vset.pattern.permute.xlu0 0
  %1212 = vperm.xlu0 %1211, %v1146
  %v1213 = vpop.permute.xlu0 %1212
  %1216 = vset.pattern.permute.xlu0 0
  %1217 = vperm.xlu0 %1216, %v1147
  %v1218 = vpop.permute.xlu0 %1217
  %1221 = vset.pattern.permute.xlu0 0
  %1222 = vperm.xlu0 %1221, %v1148
  %v1223 = vpop.permute.xlu0 %1222
  %1226 = vset.pattern.permute.xlu0 0
  %1227 = vperm.xlu0 %1226, %v1149
  %v1228 = vpop.permute.xlu0 %1227
  %1231 = vset.pattern.permute.xlu0 0
  %1232 = vperm.xlu0 %1231, %v1150
  %v1233 = vpop.permute.xlu0 %1232
  %1236 = vset.pattern.permute.xlu0 0
  %1237 = vperm.xlu0 %1236, %v1151
  %v1238 = vpop.permute.xlu0 %1237
  %1241 = vset.pattern.permute.xlu0 0
  %1242 = vperm.xlu0 %1241, %v1152
  %v1243 = vpop.permute.xlu0 %1242
  %1246 = vset.pattern.permute.xlu0 0
  %1247 = vperm.xlu0 %1246, %v1153
  %v1248 = vpop.permute.xlu0 %1247
  %1251 = vset.pattern.permute.xlu0 0
  %1252 = vperm.xlu0 %1251, %v1154
  %v1253 = vpop.permute.xlu0 %1252
  %1256 = vset.pattern.permute.xlu0 0
  %1257 = vperm.xlu0 %1256, %v1155
  %v1258 = vpop.permute.xlu0 %1257
  %1261 = vset.pattern.permute.xlu0 0
  %1262 = vperm.xlu0 %1261, %v1156
  %v1263 = vpop.permute.xlu0 %1262
  %1266 = vset.pattern.permute.xlu0 0
  %1267 = vperm.xlu0 %1266, %v1157
  %v1268 = vpop.permute.xlu0 %1267
  %1271 = vset.pattern.permute.xlu0 0
  %1272 = vperm.xlu0 %1271, %v1158
  %v1273 = vpop.permute.xlu0 %1272
  %1276 = vset.pattern.permute.xlu0 0
  %1277 = vperm.xlu0 %1276, %v1159
  %v1278 = vpop.permute.xlu0 %1277
  %1281 = vset.pattern.permute.xlu0 0
  %1282 = vperm.xlu0 %1281, %v1160
  %v1283 = vpop.permute.xlu0 %1282
  %1286 = vset.pattern.permute.xlu0 0
  %1287 = vperm.xlu0 %1286, %v1161
  %v1288 = vpop.permute.xlu0 %1287
  %1291 = vset.pattern.permute.xlu0 0
  %1292 = vperm.xlu0 %1291, %v1162
  %v1293 = vpop.permute.xlu0 %1292
  %1296 = vset.pattern.permute.xlu0 0
  %1297 = vperm.xlu0 %1296, %v1163
  %v1298 = vpop.permute.xlu0 %1297
  %1301 = vset.pattern.permute.xlu0 0
  %1302 = vperm.xlu0 %1301, %v1164
  %v1303 = vpop.permute.xlu0 %1302
  %1306 = vset.pattern.permute.xlu0 0
  %1307 = vperm.xlu0 %1306, %v1165
  %v1308 = vpop.permute.xlu0 %1307
  %1311 = vset.pattern.permute.xlu0 0
  %1312 = vperm.xlu0 %1311, %v1166
  %v1313 = vpop.permute.xlu0 %1312
  %1316 = vset.pattern.permute.xlu0 0
  %1317 = vperm.xlu0 %1316, %v1167
  %v1318 = vpop.permute.xlu0 %1317
  %1321 = vset.pattern.permute.xlu0 0
  %1322 = vperm.xlu0 %1321, %v1168
  %v1323 = vpop.permute.xlu0 %1322
  %1326 = vset.pattern.permute.xlu0 0
  %1327 = vperm.xlu0 %1326, %v1169
  %v1328 = vpop.permute.xlu0 %1327
  %v1330 = vadd.f32 %v1106, %v1173
  %v1331 = vadd.f32 %v1107, %v1178
  %v1332 = vadd.f32 %v1108, %v1183
  %v1333 = vadd.f32 %v1109, %v1188
  %v1334 = vadd.f32 %v1110, %v1193
  %v1335 = vadd.f32 %v1111, %v1198
  %v1336 = vadd.f32 %v1112, %v1203
  %v1337 = vadd.f32 %v1113, %v1208
  %v1338 = vadd.f32 %v1114, %v1213
  %v1339 = vadd.f32 %v1115, %v1218
  %v1340 = vadd.f32 %v1116, %v1223
  %v1341 = vadd.f32 %v1117, %v1228
  %v1342 = vadd.f32 %v1118, %v1233
  %v1343 = vadd.f32 %v1119, %v1238
  %v1344 = vadd.f32 %v1120, %v1243
  %v1345 = vadd.f32 %v1121, %v1248
  %v1346 = vadd.f32 %v1122, %v1253
  %v1347 = vadd.f32 %v1123, %v1258
  %v1348 = vadd.f32 %v1124, %v1263
  %v1349 = vadd.f32 %v1125, %v1268
  %v1350 = vadd.f32 %v1126, %v1273
  %v1351 = vadd.f32 %v1127, %v1278
  %v1352 = vadd.f32 %v1128, %v1283
  %v1353 = vadd.f32 %v1129, %v1288
  %v1354 = vadd.f32 %v1130, %v1293
  %v1355 = vadd.f32 %v1131, %v1298
  %v1356 = vadd.f32 %v1132, %v1303
  %v1357 = vadd.f32 %v1133, %v1308
  %v1358 = vadd.f32 %v1134, %v1313
  %v1359 = vadd.f32 %v1135, %v1318
  %v1360 = vadd.f32 %v1136, %v1323
  %v1361 = vadd.f32 %v1137, %v1328
  %vm1362 = vcmask 36864
  %1363 = vst.msk [vmem:[%s3] sm:$0x1f] %vm1362, %v1330
  %1364 = vst.msk [vmem:[%s3 + $0x8] sm:$0x1f] %vm1362, %v1331
  %1365 = vst.msk [vmem:[%s3 + $0x10] sm:$0x1f] %vm1362, %v1332
  %1366 = vst.msk [vmem:[%s3 + $0x18] sm:$0x1f] %vm1362, %v1333
  %1367 = vst.msk [vmem:[%s3 + $0x20] sm:$0x1f] %vm1362, %v1334
  %1368 = vst.msk [vmem:[%s3 + $0x28] sm:$0x1f] %vm1362, %v1335
  %1369 = vst.msk [vmem:[%s3 + $0x30] sm:$0x1f] %vm1362, %v1336
  %1370 = vst.msk [vmem:[%s3 + $0x38] sm:$0x1f] %vm1362, %v1337
  %1371 = vst.msk [vmem:[%s3 + $0x40] sm:$0x1f] %vm1362, %v1338
  %1372 = vst.msk [vmem:[%s3 + $0x48] sm:$0x1f] %vm1362, %v1339
  %1373 = vst.msk [vmem:[%s3 + $0x50] sm:$0x1f] %vm1362, %v1340
  %1374 = vst.msk [vmem:[%s3 + $0x58] sm:$0x1f] %vm1362, %v1341
  %1375 = vst.msk [vmem:[%s3 + $0x60] sm:$0x1f] %vm1362, %v1342
  %1376 = vst.msk [vmem:[%s3 + $0x68] sm:$0x1f] %vm1362, %v1343
  %1377 = vst.msk [vmem:[%s3 + $0x70] sm:$0x1f] %vm1362, %v1344
  %1378 = vst.msk [vmem:[%s3 + $0x78] sm:$0x1f] %vm1362, %v1345
  %1379 = vst.msk [vmem:[%s3 + $0x80] sm:$0x1f] %vm1362, %v1346
  %1380 = vst.msk [vmem:[%s3 + $0x88] sm:$0x1f] %vm1362, %v1347
  %1381 = vst.msk [vmem:[%s3 + $0x90] sm:$0x1f] %vm1362, %v1348
  %1382 = vst.msk [vmem:[%s3 + $0x98] sm:$0x1f] %vm1362, %v1349
  %1383 = vst.msk [vmem:[%s3 + $0xa0] sm:$0x1f] %vm1362, %v1350
  %1384 = vst.msk [vmem:[%s3 + $0xa8] sm:$0x1f] %vm1362, %v1351
  %1385 = vst.msk [vmem:[%s3 + $0xb0] sm:$0x1f] %vm1362, %v1352
  %1386 = vst.msk [vmem:[%s3 + $0xb8] sm:$0x1f] %vm1362, %v1353
  %1387 = vst.msk [vmem:[%s3 + $0xc0] sm:$0x1f] %vm1362, %v1354
  %1388 = vst.msk [vmem:[%s3 + $0xc8] sm:$0x1f] %vm1362, %v1355
  %1389 = vst.msk [vmem:[%s3 + $0xd0] sm:$0x1f] %vm1362, %v1356
  %1390 = vst.msk [vmem:[%s3 + $0xd8] sm:$0x1f] %vm1362, %v1357
  %1391 = vst.msk [vmem:[%s3 + $0xe0] sm:$0x1f] %vm1362, %v1358
  %1392 = vst.msk [vmem:[%s3 + $0xe8] sm:$0x1f] %vm1362, %v1359
  %1393 = vst.msk [vmem:[%s3 + $0xf0] sm:$0x1f] %vm1362, %v1360
  %1394 = vst.msk [vmem:[%s3 + $0xf8] sm:$0x1f] %vm1362, %v1361
  // Predicated region
  $region14: #{tpu_custom_call.1} parent=0 // pred_check
    _
  $region15: #{tpu_custom_call.1} parent=0 // pred_check_branch
    %1396 = sbr.rel (0) target = $region17
  $region16: #{tpu_custom_call.1} parent=0 // pred_region
    _
  $region17: #{tpu_custom_call.1} parent=0 // pred_fallthru
    _
  // Predicated region
  $region18: #{tpu_custom_call.1} parent=0 // pred_check
    _
  $region19: #{tpu_custom_call.1} parent=0 // pred_check_branch
    %1398 = sbr.rel (0) target = $region21
  $region20: #{tpu_custom_call.1} parent=0 // pred_region
    _
  $region21: #{tpu_custom_call.1} parent=0 // pred_fallthru
    _

</llo_original>
